<compile_context>
chip_gen: v5e
topology: v5e:2x2
jax: 0.10.0
libtpu: 0.0.40
codegen_flags: <defaults>
</compile_context>

<pallas_src>
import jax
import jax.numpy as jnp
from jax.experimental import pallas as pl
from jax.experimental.pallas import tpu as pltpu


def _round_up(n, m):
    return ((n + m - 1) // m) * m


def _simplenet_kernel(x_ref, w1_ref, b1_ref, w2_ref, b2_ref, o_ref):
    # Two MXU matmuls (bf16 operands, f32 accumulation) + VPU bias/ReLU,
    # all resident in VMEM -- the hidden activation never touches HBM.
    x = x_ref[...]
    h = jnp.dot(x, w1_ref[...], preferred_element_type=jnp.float32)
    h = jnp.maximum(h + b1_ref[...], 0.0)            # bias + ReLU in f32
    o = jnp.dot(h.astype(w2_ref.dtype), w2_ref[...],
                preferred_element_type=jnp.float32) + b2_ref[...]
    o_ref[...] = o.astype(o_ref.dtype)


def simplenet_forward(x, w1, b1, w2, b2, *, tb=None, compute_dtype=jnp.bfloat16):
    """Fused SimpleNet forward.

    x:  [B, in_dim]
    w1: [in_dim, hidden]   b1: [1, hidden]
    w2: [hidden, out_dim]  b2: [1, out_dim]
    returns [B, out_dim] in x.dtype.
    """
    B, in_dim = x.shape
    hidden = w1.shape[1]
    out_dim = w2.shape[1]
    out_dtype = x.dtype

    # Lane-dense padding of the hidden / output feature axes.
    hid_p = _round_up(hidden, 128)
    out_p = _round_up(out_dim, 128)

    # Batch tile: largest multiple of 8 (sublane) up to 512 rows.
    if tb is None:
        tb = min(512, _round_up(B, 8))
    tb = max(8, _round_up(tb, 8))
    b_p = _round_up(B, tb)
    grid = (b_p // tb,)

    csz = jnp.dtype(compute_dtype).itemsize

    # bf16 MXU operands (zero-padded), f32 biases.
    x_p = jnp.zeros((b_p, in_dim), compute_dtype).at[:B, :].set(
        x.astype(compute_dtype))
    w1_p = jnp.zeros((in_dim, hid_p), compute_dtype).at[:, :hidden].set(
        w1.astype(compute_dtype))
    b1_p = jnp.zeros((1, hid_p), jnp.float32).at[:, :hidden].set(
        b1.astype(jnp.float32))
    w2_p = jnp.zeros((hid_p, out_p), compute_dtype).at[:hidden, :out_dim].set(
        w2.astype(compute_dtype))
    b2_p = jnp.zeros((1, out_p), jnp.float32).at[:, :out_dim].set(
        b2.astype(jnp.float32))

    # VMEM budget: double-buffered x/out tiles + resident (but still
    # double-buffered by BlockSpec) weights/biases + f32 intermediates,
    # with 4x headroom, capped at v7x's 64 MiB physical VMEM.
    vmem_est = (
        2 * (tb * in_dim * csz + tb * out_p * 4)
        + 2 * (in_dim * hid_p * csz + hid_p * 4 + hid_p * out_p * csz + out_p * 4)
        + tb * hid_p * 4 + tb * out_p * 4)
    vmem_limit = int(max(8 << 20, min(64 << 20, 4 * vmem_est)))
    # TODO(synk): if the weights outgrow this budget (e.g. 4k x 4k on v7x),
    # tile hidden/out and accumulate fc2 over a trailing "arbitrary" grid axis.

    out_padded = pl.pallas_call(
        _simplenet_kernel,
        out_shape=jax.ShapeDtypeStruct((b_p, out_p), out_dtype),
        grid=grid,
        in_specs=[
            pl.BlockSpec((tb, in_dim), lambda i: (i, 0)),     # x: batch-tiled
            pl.BlockSpec((in_dim, hid_p), lambda i: (0, 0)),  # w1: resident
            pl.BlockSpec((1, hid_p), lambda i: (0, 0)),       # b1: resident
            pl.BlockSpec((hid_p, out_p), lambda i: (0, 0)),   # w2: resident
            pl.BlockSpec((1, out_p), lambda i: (0, 0)),       # b2: resident
        ],
        out_specs=pl.BlockSpec((tb, out_p), lambda i: (i, 0)),
        compiler_params=pltpu.CompilerParams(
            dimension_semantics=("parallel",),  # lets v7x shard across 2 TCs
            vmem_limit_bytes=vmem_limit,
        ),
    )(x_p, w1_p, b1_p, w2_p, b2_p)

    return out_padded[:B, :out_dim]


def init_params(key, in_dim, hidden_dim, out_dim, dtype=jnp.float32):
    """Deterministic init mimicking torch.nn.Linear (uniform +-1/sqrt(fan_in)).
    Weights stored pre-transposed as [in_features, out_features]."""
    k1, k2, k3, k4 = jax.random.split(key, 4)
    lim1 = 1.0 / jnp.sqrt(in_dim)
    lim2 = 1.0 / jnp.sqrt(hidden_dim)
    w1 = jax.random.uniform(k1, (in_dim, hidden_dim), dtype, -lim1, lim1)
    b1 = jax.random.uniform(k2, (1, hidden_dim), dtype, -lim1, lim1)
    w2 = jax.random.uniform(k3, (hidden_dim, out_dim), dtype, -lim2, lim2)
    b2 = jax.random.uniform(k4, (1, out_dim), dtype, -lim2, lim2)
    return w1, b1, w2, b2


if __name__ == "__main__":
    key = jax.random.PRNGKey(0)
    kx, kp = jax.random.split(key)

    batch, in_dim, hidden_dim, out_dim = 16, 32, 64, 16
    x = jax.random.normal(kx, (batch, in_dim), jnp.float32)
    w1, b1, w2, b2 = init_params(kp, in_dim, hidden_dim, out_dim)

    # tb=8 -> grid=(2,): exercises the batch-tiled pipeline even at demo size.
    out = simplenet_forward(x, w1, b1, w2, b2, tb=8)
    out = jax.block_until_ready(out)
    assert out.shape == (batch, out_dim)

    # Reference matching the kernel's bf16 quantization of the MXU operands.
    xb, w1b, w2b = (a.astype(jnp.bfloat16) for a in (x, w1, w2))
    h_ref = jnp.maximum(
        jnp.dot(xb, w1b, preferred_element_type=jnp.float32) + b1, 0.0)
    ref_bf16 = jnp.dot(h_ref.astype(jnp.bfloat16), w2b,
                       preferred_element_type=jnp.float32) + b2
    assert jnp.allclose(out, ref_bf16, atol=2e-3, rtol=2e-3)

    # Loose sanity check against the pure-f32 reference (bf16 rounding only).
    ref_f32 = jnp.maximum(x @ w1 + b1, 0.0) @ w2 + b2
    assert jnp.allclose(out, ref_f32, atol=5e-2, rtol=5e-2)

    print("KERNEL_OK")
</pallas_src>

<mosaic_0001>
module attributes {stable_mosaic.version = 11 : i64} {
  func.func @_simplenet_kernel(%arg0: i32, %arg1: memref<8x32xbf16, #tpu.memory_space<vmem>>, %arg2: memref<32x128xbf16, #tpu.memory_space<vmem>>, %arg3: memref<1x128xf32, #tpu.memory_space<vmem>>, %arg4: memref<128x128xbf16, #tpu.memory_space<vmem>>, %arg5: memref<1x128xf32, #tpu.memory_space<vmem>>, %arg6: memref<8x128xf32, #tpu.memory_space<vmem>>) attributes {dimension_semantics = [#tpu.dimension_semantics<parallel>], iteration_bounds = array<i64: 2>, scalar_prefetch = 0 : i64, scratch_operands = 0 : i64, tpu.core_type = #tpu.core_type<tc>, window_params = [{transform_indices = @transform_0, window_bounds = array<i64: 8, 32>}, {pipeline_mode = #tpu.pipeline_mode<synchronous>, transform_indices = @transform_1, window_bounds = array<i64: 32, 128>}, {pipeline_mode = #tpu.pipeline_mode<synchronous>, transform_indices = @transform_2, window_bounds = array<i64: 1, 128>}, {pipeline_mode = #tpu.pipeline_mode<synchronous>, transform_indices = @transform_3, window_bounds = array<i64: 128, 128>}, {pipeline_mode = #tpu.pipeline_mode<synchronous>, transform_indices = @transform_4, window_bounds = array<i64: 1, 128>}, {transform_indices = @transform_5, window_bounds = array<i64: 8, 128>}]} {
    %c0 = arith.constant 0 : index
    %c0_0 = arith.constant 0 : index
    %0 = vector.load %arg1[%c0, %c0_0] : memref<8x32xbf16, #tpu.memory_space<vmem>>, vector<8x32xbf16>
    %c0_1 = arith.constant 0 : index
    %c0_2 = arith.constant 0 : index
    %1 = vector.load %arg2[%c0_1, %c0_2] : memref<32x128xbf16, #tpu.memory_space<vmem>>, vector<32x128xbf16>
    %cst = arith.constant dense<0.000000e+00> : vector<8x128xf32>
    %2 = tpu.matmul %0, %1, %cst {dimension_numbers = #tpu.dot_dimension_numbers<[1], [0], [0], [1], [0, 0, 1, 1], [], []>} : vector<8x32xbf16>, vector<32x128xbf16>, vector<8x128xf32> -> vector<8x128xf32>
    %c0_3 = arith.constant 0 : index
    %c0_4 = arith.constant 0 : index
    %3 = vector.load %arg3[%c0_3, %c0_4] : memref<1x128xf32, #tpu.memory_space<vmem>>, vector<1x128xf32>
    %4 = vector.broadcast %3 : vector<1x128xf32> to vector<8x128xf32>
    %5 = arith.addf %2, %4 : vector<8x128xf32>
    %cst_5 = arith.constant 0.000000e+00 : f32
    %6 = vector.broadcast %cst_5 : f32 to vector<8x128xf32>
    %7 = arith.maximumf %5, %6 : vector<8x128xf32>
    %8 = arith.truncf %7 : vector<8x128xf32> to vector<8x128xbf16>
    %c0_6 = arith.constant 0 : index
    %c0_7 = arith.constant 0 : index
    %9 = vector.load %arg4[%c0_6, %c0_7] : memref<128x128xbf16, #tpu.memory_space<vmem>>, vector<128x128xbf16>
    %cst_8 = arith.constant dense<0.000000e+00> : vector<8x128xf32>
    %10 = tpu.matmul %8, %9, %cst_8 {dimension_numbers = #tpu.dot_dimension_numbers<[1], [0], [0], [1], [0, 0, 1, 1], [], []>} : vector<8x128xbf16>, vector<128x128xbf16>, vector<8x128xf32> -> vector<8x128xf32>
    %c0_9 = arith.constant 0 : index
    %c0_10 = arith.constant 0 : index
    %11 = vector.load %arg5[%c0_9, %c0_10] : memref<1x128xf32, #tpu.memory_space<vmem>>, vector<1x128xf32>
    %12 = vector.broadcast %11 : vector<1x128xf32> to vector<8x128xf32>
    %13 = arith.addf %10, %12 : vector<8x128xf32>
    %c0_11 = arith.constant 0 : index
    %c0_12 = arith.constant 0 : index
    %14 = vector.load %arg6[%c0_11, %c0_12] : memref<8x128xf32, #tpu.memory_space<vmem>>, vector<8x128xf32>
    tpu.vector_store %arg6[%c0_11, %c0_12], %13 {strides = array<i32>} : memref<8x128xf32, #tpu.memory_space<vmem>>, vector<8x128xf32>,
    return
  }
  func.func @transform_0(%arg0: i32) -> (i32, i32) {
    %c0_i32 = arith.constant 0 : i32
    %c0_i32_0 = arith.constant 0 : i32
    return %arg0, %c0_i32 : i32, i32
  }
  func.func @transform_1(%arg0: i32) -> (i32, i32) {
    %c0_i32 = arith.constant 0 : i32
    %c0_i32_0 = arith.constant 0 : i32
    %c0_i32_1 = arith.constant 0 : i32
    return %c0_i32, %c0_i32_0 : i32, i32
  }
  func.func @transform_2(%arg0: i32) -> (i32, i32) {
    %c0_i32 = arith.constant 0 : i32
    %c0_i32_0 = arith.constant 0 : i32
    %c0_i32_1 = arith.constant 0 : i32
    return %c0_i32, %c0_i32_0 : i32, i32
  }
  func.func @transform_3(%arg0: i32) -> (i32, i32) {
    %c0_i32 = arith.constant 0 : i32
    %c0_i32_0 = arith.constant 0 : i32
    %c0_i32_1 = arith.constant 0 : i32
    return %c0_i32, %c0_i32_0 : i32, i32
  }
  func.func @transform_4(%arg0: i32) -> (i32, i32) {
    %c0_i32 = arith.constant 0 : i32
    %c0_i32_0 = arith.constant 0 : i32
    %c0_i32_1 = arith.constant 0 : i32
    return %c0_i32, %c0_i32_0 : i32, i32
  }
  func.func @transform_5(%arg0: i32) -> (i32, i32) {
    %c0_i32 = arith.constant 0 : i32
    %c0_i32_0 = arith.constant 0 : i32
    return %arg0, %c0_i32 : i32, i32
  }
}

</mosaic_0001>

<llo_original>
// kernel: tpu_custom_call.1
$region0: #{tpu_custom_call.1}
  #allocation0 [shape = 'u32[]', space=smem, size = 0x4, offset = 0x4, fixed_abs, tag = 'smem constant byte address 0x4 - core index']
  #allocation1 [shape = 'u32[72,128]{1,0:T(1,128)}', space=vmem, size = 0x9000, scoped, tag = 'internal scratch']
  %s0 = inlined_call_operand.hbm [shape: bf16[16,32], index: 0, kind: input, shape index: {}]
  %s1 = inlined_call_operand.hbm [shape: bf16[32,128], index: 1, kind: input, shape index: {}]
  %s2 = inlined_call_operand.vmem [shape: f32[1,128], index: 2, kind: input, shape index: {}]
  %s3 = inlined_call_operand.hbm [shape: bf16[128,128], index: 3, kind: input, shape index: {}]
  %s4 = inlined_call_operand.vmem [shape: f32[1,128], index: 4, kind: input, shape index: {}]
  %s5 = inlined_call_operand.hbm [shape: f32[16,128], index: 5, kind: output, shape index: {}]
  %s6 = sld [smem:[#allocation0]]
  $region65: #{tpu_custom_call.1} parent=0
    _
  %s8 = ssub.s32 1, %s6
  %s9 = scalar_select 0, %s8, %s6
  $region1: #{tpu_custom_call.1} parent=0
    #allocation2 [shape = 'u8[4096]{0}', space=vmem, size = 0x1000, scoped, tag = 'input window, operand 0']
    #allocation3 [shape = 's32[2]{0}', space=sflag, size = 0x8, scoped, tag = 'scoped memory for tpu_custom_call.1']
    #allocation4 [shape = 's32[2]{0}', space=sflag, size = 0x8, scoped, tag = 'scoped memory for tpu_custom_call.1']
    #allocation5 [shape = 'u8[8192]{0}', space=vmem, size = 0x2000, scoped, tag = 'input window, operand 1, single buffered']
    #allocation6 [shape = 's32[1]{0}', space=sflag, size = 0x4, scoped, tag = 'scoped memory for tpu_custom_call.1']
    #allocation7 [shape = 'u8[32768]{0}', space=vmem, size = 0x8000, scoped, tag = 'input window, operand 3, single buffered']
    #allocation8 [shape = 'u8[8192]{0}', space=vmem, size = 0x2000, scoped, tag = 'output window, operand 0']
    %10 = vsyncpa [#allocation3], 0
    %s11 = scalar_lea.sflag [#allocation3], 1
    %12 = vsyncpa %s11, 0
    %13 = vsyncpa [#allocation6], 0
    %14 = vsyncpa [#allocation4], 0
    %s15 = scalar_lea.sflag [#allocation4], 1
    %16 = vsyncpa %s15, 0
    loop: start=0, step=1, limit=4
    $region2: #{tpu_custom_call.1} parent=1 // loop_pre_header
      _
    $region3: #{tpu_custom_call.1} parent=1 // loop_header
      %s18 = sphi 0, %s22
      %p19 = scmp.ge.s32.totalorder %s18, 4
      %s28 = sphi 0, %s30
      %s31 = sphi 0, %s28
      %s32 = sphi 0, %s31
      %s48 = sphi 0, %s32
      %s52 = sphi 0, %s52
      %s54 = sphi 0, %s52
      %s55 = sphi 0, %s54
      %s69 = sphi 0, %s55
      %s73 = sphi 0, %s73
      %s75 = sphi 0, %s73
      %s76 = sphi 0, %s75
      %s90 = sphi 0, %s76
      %s94 = sphi 0, %s94
      %s96 = sphi 0, %s94
      %s97 = sphi 0, %s96
      %s111 = sphi 0, %s97
      %s115 = sphi 0, %s115
      %s117 = sphi 0, %s115
      %s118 = sphi 0, %s117
      %s132 = sphi 0, %s118
      %s138 = sphi 0, %s140
      %s141 = sphi 0, %s138
      %s142 = sphi 0, %s141
      %s158 = sphi 0, %s142
    $region4: #{tpu_custom_call.1} parent=1 // loop_header_branch
      %21 = sbr.rel (%p19) target = $region8
    $region5: #{tpu_custom_call.1} parent=1 // loop_body
      %s23 = ssub.s32 %s18, 1
      %s24 = ssub.s32 %s18, 2
      %s25 = sadd.s32 %s18, 1
      %s26 = ssub.s32 %s18, %s25
      %p27 = scmp.eq.s32.totalorder %s26, 0
      %s29 = sadd.s32 %s28, 1
      %s30 = scalar_select %p27, %s28, %s29
      %p33 = pneg %p27
      %p34 = scmp.eq.s32.totalorder %s18, 1
      %p35 = por %p33, %p34
      %p36 = scmp.ne.s32.totalorder %s28, %s31
      %p37 = scmp.eq.s32.totalorder %s18, 0
      %p38 = por %p36, %p37
      %p39 = scmp.ne.s32.totalorder %s28, %s31
      %p40 = scmp.eq.s32.totalorder %s23, 1
      %p41 = por %p39, %p40
      %p42 = scmp.ne.s32.totalorder %s31, %s32
      %p43 = scmp.eq.s32.totalorder %s23, 0
      %p44 = por %p42, %p43
      %p45 = scmp.ne.s32.totalorder %s31, %s32
      %p46 = scmp.eq.s32.totalorder %s24, 1
      %p47 = por %p45, %p46
      %p49 = scmp.ne.s32.totalorder %s32, %s48
      %p50 = scmp.eq.s32.totalorder %s24, 0
      %p51 = por %p49, %p50
      %s53 = sadd.s32 %s52, 1
      %p56 = scmp.eq.s32.totalorder %s18, 1
      %p57 = scmp.ne.s32.totalorder %s52, %s54
      %p58 = scmp.eq.s32.totalorder %s18, 0
      %p59 = por %p57, %p58
      %p60 = scmp.ne.s32.totalorder %s52, %s54
      %p61 = scmp.eq.s32.totalorder %s23, 1
      %p62 = por %p60, %p61
      %p63 = scmp.ne.s32.totalorder %s54, %s55
      %p64 = scmp.eq.s32.totalorder %s23, 0
      %p65 = por %p63, %p64
      %p66 = scmp.ne.s32.totalorder %s54, %s55
      %p67 = scmp.eq.s32.totalorder %s24, 1
      %p68 = por %p66, %p67
      %p70 = scmp.ne.s32.totalorder %s55, %s69
      %p71 = scmp.eq.s32.totalorder %s24, 0
      %p72 = por %p70, %p71
      %s74 = sadd.s32 %s73, 1
      %p77 = scmp.eq.s32.totalorder %s18, 1
      %p78 = scmp.ne.s32.totalorder %s73, %s75
      %p79 = scmp.eq.s32.totalorder %s18, 0
      %p80 = por %p78, %p79
      %p81 = scmp.ne.s32.totalorder %s73, %s75
      %p82 = scmp.eq.s32.totalorder %s23, 1
      %p83 = por %p81, %p82
      %p84 = scmp.ne.s32.totalorder %s75, %s76
      %p85 = scmp.eq.s32.totalorder %s23, 0
      %p86 = por %p84, %p85
      %p87 = scmp.ne.s32.totalorder %s75, %s76
      %p88 = scmp.eq.s32.totalorder %s24, 1
      %p89 = por %p87, %p88
      %p91 = scmp.ne.s32.totalorder %s76, %s90
      %p92 = scmp.eq.s32.totalorder %s24, 0
      %p93 = por %p91, %p92
      %s95 = sadd.s32 %s94, 1
      %p98 = scmp.eq.s32.totalorder %s18, 1
      %p99 = scmp.ne.s32.totalorder %s94, %s96
      %p100 = scmp.eq.s32.totalorder %s18, 0
      %p101 = por %p99, %p100
      %p102 = scmp.ne.s32.totalorder %s94, %s96
      %p103 = scmp.eq.s32.totalorder %s23, 1
      %p104 = por %p102, %p103
      %p105 = scmp.ne.s32.totalorder %s96, %s97
      %p106 = scmp.eq.s32.totalorder %s23, 0
      %p107 = por %p105, %p106
      %p108 = scmp.ne.s32.totalorder %s96, %s97
      %p109 = scmp.eq.s32.totalorder %s24, 1
      %p110 = por %p108, %p109
      %p112 = scmp.ne.s32.totalorder %s97, %s111
      %p113 = scmp.eq.s32.totalorder %s24, 0
      %p114 = por %p112, %p113
      %s116 = sadd.s32 %s115, 1
      %p119 = scmp.eq.s32.totalorder %s18, 1
      %p120 = scmp.ne.s32.totalorder %s115, %s117
      %p121 = scmp.eq.s32.totalorder %s18, 0
      %p122 = por %p120, %p121
      %p123 = scmp.ne.s32.totalorder %s115, %s117
      %p124 = scmp.eq.s32.totalorder %s23, 1
      %p125 = por %p123, %p124
      %p126 = scmp.ne.s32.totalorder %s117, %s118
      %p127 = scmp.eq.s32.totalorder %s23, 0
      %p128 = por %p126, %p127
      %p129 = scmp.ne.s32.totalorder %s117, %s118
      %p130 = scmp.eq.s32.totalorder %s24, 1
      %p131 = por %p129, %p130
      %p133 = scmp.ne.s32.totalorder %s118, %s132
      %p134 = scmp.eq.s32.totalorder %s24, 0
      %p135 = por %p133, %p134
      %s136 = ssub.s32 %s18, %s25
      %p137 = scmp.eq.s32.totalorder %s136, 0
      %s139 = sadd.s32 %s138, 1
      %s140 = scalar_select %p137, %s138, %s139
      %p143 = pneg %p137
      %p144 = scmp.eq.s32.totalorder %s18, 1
      %p145 = por %p143, %p144
      %p146 = scmp.ne.s32.totalorder %s138, %s141
      %p147 = scmp.eq.s32.totalorder %s18, 0
      %p148 = por %p146, %p147
      %p149 = scmp.ne.s32.totalorder %s138, %s141
      %p150 = scmp.eq.s32.totalorder %s23, 1
      %p151 = por %p149, %p150
      %p152 = scmp.ne.s32.totalorder %s141, %s142
      %p153 = scmp.eq.s32.totalorder %s23, 0
      %p154 = por %p152, %p153
      %p155 = scmp.ne.s32.totalorder %s141, %s142
      %p156 = scmp.eq.s32.totalorder %s24, 1
      %p157 = por %p155, %p156
      %p159 = scmp.ne.s32.totalorder %s142, %s158
      %p160 = scmp.eq.s32.totalorder %s24, 0
      %p161 = por %p159, %p160
      %p162 = scmp.le.s32.totalorder 1, %s18
      %p163 = scmp.lt.s32.totalorder %s18, 3
      %p164 = pnand %p162, %p163
      %p165 = pneg %p164
      // Predicated region
      $region9: #{tpu_custom_call.1} parent=5 // pred_check
        _
      $region10: #{tpu_custom_call.1} parent=5 // pred_check_branch
        %167 = sbr.rel (%p164) target = $region12
      $region11: #{tpu_custom_call.1} parent=5 // pred_region
        %s168 = ssub.s32 %s18, 1
        // Predicated region
        $region13: #{tpu_custom_call.1} parent=11 // pred_check
          %p169 = pneg %p65
        $region14: #{tpu_custom_call.1} parent=11 // pred_check_branch
          %171 = sbr.rel (%p169) target = $region16
        $region15: #{tpu_custom_call.1} parent=11 // pred_region
          %173 = vsyncadd [#allocation6], 0
          %s174 = sshll.u32 %s1, 4
          %s175 = int_to_ptr.hbm [resolvable:$true] %s174
          %s176 = sshll.u32 [#allocation5], 4
          %s177 = int_to_ptr.vmem [resolvable:$true] %s176
          %182 = dma.hbm_to_vmem [thread:$0]  %s175, 256, %s177, [#allocation6], 64, 64, 4
        $region16: #{tpu_custom_call.1} parent=11 // pred_fallthru
          _
        // Predicated region
        $region17: #{tpu_custom_call.1} parent=11 // pred_check
          %p183 = pneg %p86
        $region18: #{tpu_custom_call.1} parent=11 // pred_check_branch
          %185 = sbr.rel (%p183) target = $region20
        $region19: #{tpu_custom_call.1} parent=11 // pred_region
          _
        $region20: #{tpu_custom_call.1} parent=11 // pred_fallthru
          _
        // Predicated region
        $region21: #{tpu_custom_call.1} parent=11 // pred_check
          %p186 = pneg %p107
        $region22: #{tpu_custom_call.1} parent=11 // pred_check_branch
          %188 = sbr.rel (%p186) target = $region24
        $region23: #{tpu_custom_call.1} parent=11 // pred_region
          %190 = vsyncadd [#allocation6], 0
          %s191 = sshll.u32 %s3, 4
          %s192 = int_to_ptr.hbm [resolvable:$true] %s191
          %s193 = sshll.u32 [#allocation7], 4
          %s194 = int_to_ptr.vmem [resolvable:$true] %s193
          %199 = dma.hbm_to_vmem [thread:$0]  %s192, 1024, %s194, [#allocation6], 64, 64, 4
        $region24: #{tpu_custom_call.1} parent=11 // pred_fallthru
          _
        // Predicated region
        $region25: #{tpu_custom_call.1} parent=11 // pred_check
          %p200 = pneg %p128
        $region26: #{tpu_custom_call.1} parent=11 // pred_check_branch
          %202 = sbr.rel (%p200) target = $region28
        $region27: #{tpu_custom_call.1} parent=11 // pred_region
          _
        $region28: #{tpu_custom_call.1} parent=11 // pred_fallthru
          _
      $region12: #{tpu_custom_call.1} parent=5 // pred_fallthru
        _
      %p203 = scmp.lt.s32.totalorder %s18, 2
      // Predicated region
      $region29: #{tpu_custom_call.1} parent=5 // pred_check
        %p204 = pneg %p203
      $region30: #{tpu_custom_call.1} parent=5 // pred_check_branch
        %206 = sbr.rel (%p204) target = $region32
      $region31: #{tpu_custom_call.1} parent=5 // pred_region
        // Predicated region
        $region33: #{tpu_custom_call.1} parent=31 // pred_check
          %p207 = pneg %p38
        $region34: #{tpu_custom_call.1} parent=31 // pred_check_branch
          %209 = sbr.rel (%p207) target = $region36
        $region35: #{tpu_custom_call.1} parent=31 // pred_region
          %s210 = sand.u32 %s28, 1
          %s211 = scalar_lea.sflag [#allocation3], %s210
          %s212 = sand.u32 %s28, 1
          %s213 = smul.addr %s212, 4
          %s214 = scalar_lea.vmem [#allocation2], %s213
          %216 = vsyncadd %s211, 0
          %s217 = smul.addr %s18, 4
          %s218 = scalar_lea.hbm %s0, %s217
          %s220 = sshll.u32 %s218, 4
          %s221 = int_to_ptr.hbm [resolvable:$true] %s220
          %s222 = sshll.u32 %s214, 4
          %s223 = int_to_ptr.vmem [resolvable:$true] %s222
          %225 = dma.hbm_to_vmem [thread:$0]  %s221, 64, %s223, %s211
        $region36: #{tpu_custom_call.1} parent=31 // pred_fallthru
          _
      $region32: #{tpu_custom_call.1} parent=5 // pred_fallthru
        _
      %p226 = scmp.le.s32.totalorder 1, %s18
      %p227 = scmp.lt.s32.totalorder %s18, 3
      %p228 = pnand %p226, %p227
      %p229 = pneg %p228
      // Predicated region
      $region37: #{tpu_custom_call.1} parent=5 // pred_check
        _
      $region38: #{tpu_custom_call.1} parent=5 // pred_check_branch
        %231 = sbr.rel (%p228) target = $region40
      $region39: #{tpu_custom_call.1} parent=5 // pred_region
        %s232 = ssub.s32 %s18, 1
        %s233 = sand.u32 %s31, 1
        %s234 = scalar_lea.sflag [#allocation3], %s233
        %s235 = sand.u32 %s31, 1
        %s236 = smul.addr %s235, 4
        %s237 = scalar_lea.vmem [#allocation2], %s236
        // Predicated region
        $region41: #{tpu_custom_call.1} parent=39 // pred_check
          %p238 = pneg %p44
        $region42: #{tpu_custom_call.1} parent=39 // pred_check_branch
          %240 = sbr.rel (%p238) target = $region44
        $region43: #{tpu_custom_call.1} parent=39 // pred_region
          %242 = dma.done %s234, 64
        $region44: #{tpu_custom_call.1} parent=39 // pred_fallthru
          _
        // Predicated region
        $region45: #{tpu_custom_call.1} parent=39 // pred_check
          %p243 = pneg %p65
        $region46: #{tpu_custom_call.1} parent=39 // pred_check_branch
          %245 = sbr.rel (%p243) target = $region48
        $region47: #{tpu_custom_call.1} parent=39 // pred_region
          %247 = dma.done [#allocation6], 256
        $region48: #{tpu_custom_call.1} parent=39 // pred_fallthru
          _
        // Predicated region
        $region49: #{tpu_custom_call.1} parent=39 // pred_check
          %p248 = pneg %p107
        $region50: #{tpu_custom_call.1} parent=39 // pred_check_branch
          %250 = sbr.rel (%p248) target = $region52
        $region51: #{tpu_custom_call.1} parent=39 // pred_region
          %252 = dma.done [#allocation6], 1024
        $region52: #{tpu_custom_call.1} parent=39 // pred_fallthru
          _
        %s253 = sand.u32 %s31, 1
        %s254 = scalar_lea.sflag [#allocation3], %s253
        %s255 = sand.u32 %s31, 1
        %s256 = smul.addr %s255, 4
        %s257 = scalar_lea.vmem [#allocation2], %s256
        %p258 = pneg %p44
        %p259 = pneg %p41
        %p260 = pneg %p65
        %p261 = pneg %p62
        %p262 = pneg %p86
        %p263 = pneg %p83
        %p264 = pneg %p107
        %p265 = pneg %p104
        %p266 = pneg %p128
        %p267 = pneg %p125
        %p268 = pneg %p154
        %p269 = pneg %p151
        %s270 = sand.u32 %s141, 1
        %s271 = scalar_lea.sflag [#allocation4], %s270
        %s272 = sand.u32 %s141, 1
        %s273 = smul.addr %s272, 8
        %s274 = scalar_lea.vmem [#allocation8], %s273
        %v276 = vld [vmem:[%s237] sm:$0xf]
        %v277 = vld [vmem:[#allocation5] sm:$0xf]
        %v278 = vld [vmem:[#allocation5 + $0x4] sm:$0xf]
        %v279 = vld [vmem:[#allocation5 + $0x8] sm:$0xf]
        %v280 = vld [vmem:[#allocation5 + $0xc] sm:$0xf]
        %v281 = vld [vmem:[%s2] sm:$0x1]
        %v283 = vperm.slane %v281, 0
        %v289 = vunpack.c.l.b16 %v277
        %v290 = vunpack.c.l.b16 %v278
        %v291 = vunpack.c.l.b16 %v279
        %v292 = vunpack.c.l.b16 %v280
        %v293 = vpack.c.b16 %v290, %v289
        %v294 = vpack.c.b16 %v292, %v291
        %vm297 = vcmask 261120
        %v299 = vsel %vm297, %v276, 0
        %301 = vmatpush.bf16.msra.mxu0 0
        %302 = vmatpush.bf16.msra.mxu0 0
        %303 = vmatpush.bf16.msra.mxu0 0
        %304 = vmatpush.bf16.msra.mxu0 0
        %305 = vmatpush.bf16.msra.mxu0 0
        %306 = vmatpush.bf16.msra.mxu0 0
        %307 = vmatpush.bf16.msra.mxu0 %v294
        %308 = vmatpush.bf16.msra.mxu0 %v293
        %309 = vmatmul.bf16.gmra.mxu0 %v299
        %v310 = vpop.f32.mrf.mxu0
        %v311 = vadd.f32 %v283, %v310
        %v312 = vpop.f32.mrf.mxu0
        %313 = vdwg.mxu0
        %v314 = vmax.f32 %v311, 0.0
        %v315 = vpack.c.bf16 %v314, %v314
        %v316 = vld [vmem:[#allocation7] sm:$0xf]
        %v317 = vld [vmem:[#allocation7 + $0x4] sm:$0xf]
        %v318 = vld [vmem:[#allocation7 + $0x8] sm:$0xf]
        %v319 = vld [vmem:[#allocation7 + $0xc] sm:$0xf]
        %v320 = vld [vmem:[#allocation7 + $0x10] sm:$0xf]
        %v321 = vld [vmem:[#allocation7 + $0x14] sm:$0xf]
        %v322 = vld [vmem:[#allocation7 + $0x18] sm:$0xf]
        %v323 = vld [vmem:[#allocation7 + $0x1c] sm:$0xf]
        %v324 = vld [vmem:[#allocation7 + $0x20] sm:$0xf]
        %v325 = vld [vmem:[#allocation7 + $0x24] sm:$0xf]
        %v326 = vld [vmem:[#allocation7 + $0x28] sm:$0xf]
        %v327 = vld [vmem:[#allocation7 + $0x2c] sm:$0xf]
        %v328 = vld [vmem:[#allocation7 + $0x30] sm:$0xf]
        %v329 = vld [vmem:[#allocation7 + $0x34] sm:$0xf]
        %v330 = vld [vmem:[#allocation7 + $0x38] sm:$0xf]
        %v331 = vld [vmem:[#allocation7 + $0x3c] sm:$0xf]
        %v332 = vld [vmem:[%s4] sm:$0x1]
        %v334 = vperm.slane %v332, 0
        %v352 = vunpack.c.l.b16 %v316
        %v353 = vunpack.c.l.b16 %v317
        %v354 = vunpack.c.l.b16 %v318
        %v355 = vunpack.c.l.b16 %v319
        %v356 = vunpack.c.l.b16 %v320
        %v357 = vunpack.c.l.b16 %v321
        %v358 = vunpack.c.l.b16 %v322
        %v359 = vunpack.c.l.b16 %v323
        %v360 = vunpack.c.l.b16 %v324
        %v361 = vunpack.c.l.b16 %v325
        %v362 = vunpack.c.l.b16 %v326
        %v363 = vunpack.c.l.b16 %v327
        %v364 = vunpack.c.l.b16 %v328
        %v365 = vunpack.c.l.b16 %v329
        %v366 = vunpack.c.l.b16 %v330
        %v367 = vunpack.c.l.b16 %v331
        %v368 = vpack.c.b16 %v353, %v352
        %v369 = vpack.c.b16 %v355, %v354
        %v370 = vpack.c.b16 %v357, %v356
        %v371 = vpack.c.b16 %v359, %v358
        %v372 = vpack.c.b16 %v361, %v360
        %v373 = vpack.c.b16 %v363, %v362
        %v374 = vpack.c.b16 %v365, %v364
        %v375 = vpack.c.b16 %v367, %v366
        %384 = vmatpush.bf16.msra.mxu0 %v375
        %385 = vmatpush.bf16.msra.mxu0 %v374
        %386 = vmatpush.bf16.msra.mxu0 %v373
        %387 = vmatpush.bf16.msra.mxu0 %v372
        %388 = vmatpush.bf16.msra.mxu0 %v371
        %389 = vmatpush.bf16.msra.mxu0 %v370
        %390 = vmatpush.bf16.msra.mxu0 %v369
        %391 = vmatpush.bf16.msra.mxu0 %v368
        %392 = vmatmul.bf16.gmra.mxu0 %v315
        %v393 = vpop.f32.mrf.mxu0
        %v394 = vadd.f32 %v334, %v393
        %v395 = vpop.f32.mrf.mxu0
        %396 = vdwg.mxu0
        %397 = vst [vmem:[%s274] sm:$0xff] %v394
        %s398 = sand.u32 %s141, 1
        %s399 = scalar_lea.sflag [#allocation4], %s398
        %s400 = sand.u32 %s141, 1
        %s401 = smul.addr %s400, 8
        %s402 = scalar_lea.vmem [#allocation8], %s401
        // Predicated region
        $region53: #{tpu_custom_call.1} parent=39 // pred_check
          %p403 = pneg %p151
        $region54: #{tpu_custom_call.1} parent=39 // pred_check_branch
          %405 = sbr.rel (%p403) target = $region56
        $region55: #{tpu_custom_call.1} parent=39 // pred_region
          %407 = vsyncadd %s399, 0
          %s408 = smul.addr %s23, 8
          %s409 = scalar_lea.hbm %s5, %s408
          %s411 = sshll.u32 %s402, 4
          %s412 = int_to_ptr.vmem [resolvable:$true] %s411
          %s413 = sshll.u32 %s409, 4
          %s414 = int_to_ptr.hbm [resolvable:$true] %s413
          %416 = dma.vmem_to_hbm [thread:$0]  %s412, 128, %s414, %s399
        $region56: #{tpu_custom_call.1} parent=39 // pred_fallthru
          _
      $region40: #{tpu_custom_call.1} parent=5 // pred_fallthru
        _
      %p417 = scmp.le.s32.totalorder 2, %s18
      // Predicated region
      $region57: #{tpu_custom_call.1} parent=5 // pred_check
        %p418 = pneg %p417
      $region58: #{tpu_custom_call.1} parent=5 // pred_check_branch
        %420 = sbr.rel (%p418) target = $region60
      $region59: #{tpu_custom_call.1} parent=5 // pred_region
        %s421 = ssub.s32 %s18, 2
        // Predicated region
        $region61: #{tpu_custom_call.1} parent=59 // pred_check
          %p422 = pneg %p157
        $region62: #{tpu_custom_call.1} parent=59 // pred_check_branch
          %424 = sbr.rel (%p422) target = $region64
        $region63: #{tpu_custom_call.1} parent=59 // pred_region
          %s425 = sand.u32 %s142, 1
          %s426 = scalar_lea.sflag [#allocation4], %s425
          %s427 = sand.u32 %s142, 1
          %s428 = smul.addr %s427, 8
          %s429 = scalar_lea.vmem [#allocation8], %s428
          %431 = dma.done %s426, 128
        $region64: #{tpu_custom_call.1} parent=59 // pred_fallthru
          _
      $region60: #{tpu_custom_call.1} parent=5 // pred_fallthru
        _
    $region6: #{tpu_custom_call.1} parent=1 // loop_footer
      %s22 = sadd.s32 1, %s18
    $region7: #{tpu_custom_call.1} parent=1 // loop_footer_branch
      %17 = sbr.rel target = $region3
    $region8: #{tpu_custom_call.1} parent=1 // loop_exit
      _
    %432 = vsyncpa [#allocation3], 1
    %s433 = scalar_lea.sflag [#allocation3], 1
    %434 = vsyncpa %s433, 1
    %435 = vsyncpa [#allocation6], 1
    %436 = vsyncpa [#allocation4], 1
    %s437 = scalar_lea.sflag [#allocation4], 1
    %438 = vsyncpa %s437, 1

</llo_original>
